<compile_context>
chip_gen: v5e
topology: v5e:2x2
jax: 0.10.0
libtpu: 0.0.40
codegen_flags: <defaults>
</compile_context>

<pallas_src>
import numpy as np
import jax
import jax.numpy as jnp
from jax.experimental import pallas as pl
from jax.experimental.pallas import tpu as pltpu

EPS = 1e-5


# ----------------------------- Pallas kernels ------------------------------ #

def _shifted_tap(act, delta, hw):
    """tap[:, p] = act[:, p + delta] where p + delta is in range, 0 elsewhere.

    Static lane slices + concat (lowers to XLU lane shifts).  The validity mask
    applied afterwards zeroes every position whose source pixel lies outside
    the image, so only the in-range shift direction matters here."""
    if delta == 0:
        return act
    cin = act.shape[0]
    fill = jnp.zeros((cin, abs(delta)), act.dtype)
    if delta > 0:
        return jnp.concatenate([act[:, delta:], fill], axis=1)
    return jnp.concatenate([fill, act[:, :hw + delta]], axis=1)


def _conv3x3_stats(act, mask_ref, w_ref, z_ref, sum_ref, m2_ref, width):
    """One image of 3x3 SAME conv + per-image (centered) BatchNorm partials.

    act      : (Cin, H*W)      channel-major activation (lane-dense pixels)
    mask_ref : (9*Cin, H*W)    0/1 validity mask, tap-major / channel-minor
    w_ref    : (Cout, 9*Cin)   conv weight, columns ordered (kh*3+kw)*Cin + c
    z_ref    : (Cout, H*W)     pre-BN conv output (lane-dense store)
    sum_ref  : (Cout, 1)       per-image channel sum of z
    m2_ref   : (Cout, 1)       per-image centered sum of squares of z
    """
    cin, hw = act.shape

    # Nine shifted taps concatenated along the contraction dim -> a single
    # K = 9*Cin MXU matmul per image (instead of nine K = Cin dots).
    taps = []
    for kh in range(3):
        for kw in range(3):
            taps.append(_shifted_tap(act, (kh - 1) * width + (kw - 1), hw))
    col = jnp.concatenate(taps, axis=0) * mask_ref[...]          # (9*Cin, H*W)
    acc = jnp.dot(w_ref[...], col,
                  preferred_element_type=jnp.float32)            # (Cout, H*W)
    z_ref[...] = acc

    # Per-image partial BatchNorm statistics (centered -> no catastrophic
    # cancellation); merged across images with Chan's formula in JAX so the
    # image grid axis stays fully parallel.
    s = jnp.sum(acc, axis=1, keepdims=True)
    sum_ref[...] = s
    d = acc - s * (1.0 / hw)
    m2_ref[...] = jnp.sum(d * d, axis=1, keepdims=True)


def _make_conv_kernel(width, fused):
    if fused:
        def kernel(x_ref, scale_ref, shift_ref, mask_ref, w_ref,
                   z_ref, sum_ref, m2_ref):
            # Previous layer's BN+ReLU fused into this conv's input prologue
            # (per-channel scale/shift broadcast along lanes).
            act = jnp.maximum(x_ref[...] * scale_ref[...] + shift_ref[...], 0.0)
            _conv3x3_stats(act, mask_ref, w_ref, z_ref, sum_ref, m2_ref, width)
    else:
        def kernel(x_ref, mask_ref, w_ref, z_ref, sum_ref, m2_ref):
            # Conv bias omitted on purpose: cancelled by training-mode BN.
            _conv3x3_stats(x_ref[...], mask_ref, w_ref, z_ref, sum_ref, m2_ref,
                           width)
    return kernel


# ------------------------------- JAX glue ---------------------------------- #

def _tap_mask(h, w, cin):
    """(9*cin, h*w) 0/1 mask: row (kh*3+kw)*cin + c marks output pixels whose
    source pixel (y+kh-1, x+kw-1) lies inside the image (== SAME zero pad)."""
    yy, xx = np.meshgrid(np.arange(h), np.arange(w), indexing="ij")
    yy = yy.reshape(-1)
    xx = xx.reshape(-1)
    rows = []
    for kh in range(3):
        for kw in range(3):
            sy, sx = yy + kh - 1, xx + kw - 1
            valid = ((sy >= 0) & (sy < h) & (sx >= 0) & (sx < w))
            rows.append(np.broadcast_to(valid.astype(np.float32), (cin, h * w)))
    return jnp.asarray(np.concatenate(rows, axis=0))


def _conv_layer(x_ncp, mask, wmat, width, scale=None, shift=None):
    """3x3 SAME conv (no bias) on channel-major (N, Cin, H*W) input.
    If scale/shift are given, the previous layer's BN+ReLU is fused into the
    input prologue.  Returns z (N, Cout, H*W) plus per-image stat partials."""
    n, cin, hw = x_ncp.shape
    cout = wmat.shape[0]
    fused = scale is not None

    in_specs = [pl.BlockSpec((None, cin, hw), lambda i: (i, 0, 0))]
    args = [x_ncp]
    if fused:
        in_specs += [pl.BlockSpec((cin, 1), lambda i: (0, 0)),
                     pl.BlockSpec((cin, 1), lambda i: (0, 0))]
        args += [scale.reshape(cin, 1), shift.reshape(cin, 1)]
    in_specs += [pl.BlockSpec((9 * cin, hw), lambda i: (0, 0)),
                 pl.BlockSpec((cout, 9 * cin), lambda i: (0, 0))]
    args += [mask, wmat]

    z, s, m2 = pl.pallas_call(
        _make_conv_kernel(width, fused),
        out_shape=(jax.ShapeDtypeStruct((n, cout, hw), jnp.float32),
                   jax.ShapeDtypeStruct((n, cout, 1), jnp.float32),
                   jax.ShapeDtypeStruct((n, cout, 1), jnp.float32)),
        grid_spec=pltpu.PrefetchScalarGridSpec(
            num_scalar_prefetch=0,
            grid=(n,),
            in_specs=in_specs,
            out_specs=[pl.BlockSpec((None, cout, hw), lambda i: (i, 0, 0)),
                       pl.BlockSpec((None, cout, 1), lambda i: (i, 0, 0)),
                       pl.BlockSpec((None, cout, 1), lambda i: (i, 0, 0))]),
        compiler_params=pltpu.CompilerParams(
            # Per-image partial stats -> the image axis is truly parallel
            # (splits across both TensorCores on v7x; negligible per-step
            # overhead on single-TC v5e/v6e at these shapes).
            dimension_semantics=("parallel",)),
    )(*args)
    return z, s, m2


def _batch_affine(sums, m2s, hw, gamma, beta):
    """Merge per-image (sum, centered-SS) partials with Chan's formula into the
    training-mode BatchNorm scale/shift (biased variance, eps=1e-5)."""
    sums = sums[:, :, 0]                     # (N, C)
    m2s = m2s[:, :, 0]
    total = sums.shape[0] * hw
    mean = jnp.sum(sums, axis=0) / total
    mean_i = sums / hw
    var = (jnp.sum(m2s, axis=0)
           + hw * jnp.sum((mean_i - mean) ** 2, axis=0)) / total
    scale = gamma / jnp.sqrt(var + EPS)
    shift = beta - mean * scale
    return scale, shift


@jax.jit
def base_conv2d_forward(x_nchw, params):
    """BaseConv2D.forward: NCHW in -> NCHW out (training-mode BatchNorm)."""
    n, cin, h, w = x_nchw.shape
    cout = params["w1"].shape[0]
    hw = h * w

    # NCHW is already channel-major: (N, C, H*W) is a free view -- no transpose.
    x = x_nchw.reshape(n, cin, hw)
    # Torch OIHW weights -> (Cout, 9*Cin) with columns (kh*3+kw)*Cin + c.
    wmat1 = params["w1"].transpose(0, 2, 3, 1).reshape(cout, 9 * cin)
    wmat2 = params["w2"].transpose(0, 2, 3, 1).reshape(cout, 9 * cout)
    mask1 = _tap_mask(h, w, cin)
    mask2 = _tap_mask(h, w, cout)

    # Layer 1: conv1 + per-image stats (bias dropped: cancelled by BN).
    z1, s1, m21 = _conv_layer(x, mask1, wmat1, w)
    scale1, shift1 = _batch_affine(s1, m21, hw, params["g1"], params["beta1"])

    # Layer 2: BN1+ReLU fused into conv2's input prologue, + stats.
    z2, s2, m22 = _conv_layer(z1, mask2, wmat2, w, scale1, shift1)
    scale2, shift2 = _batch_affine(s2, m22, hw, params["g2"], params["beta2"])

    # Final BN2+ReLU: tiny fused XLA elementwise pass directly on the already
    # NCHW-shaped z2 (per review: no third pallas_call, no output transpose).
    y = jnp.maximum(z2 * scale2[None, :, None] + shift2[None, :, None], 0.0)
    return y.reshape(n, cout, h, w)


# --------------------- deterministic parameter init ------------------------ #

def init_params(key, cin, cout):
    ks = jax.random.split(key, 8)
    return {
        # conv weights stored torch-style OIHW (Cout, Cin, 3, 3)
        "w1": 0.1 * jax.random.normal(ks[0], (cout, cin, 3, 3), jnp.float32),
        "b1": 0.1 * jax.random.normal(ks[1], (cout,), jnp.float32),
        "w2": 0.1 * jax.random.normal(ks[2], (cout, cout, 3, 3), jnp.float32),
        "b2": 0.1 * jax.random.normal(ks[3], (cout,), jnp.float32),
        "g1": 1.0 + 0.1 * jax.random.normal(ks[4], (cout,), jnp.float32),
        "beta1": 0.1 * jax.random.normal(ks[5], (cout,), jnp.float32),
        "g2": 1.0 + 0.1 * jax.random.normal(ks[6], (cout,), jnp.float32),
        "beta2": 0.1 * jax.random.normal(ks[7], (cout,), jnp.float32),
    }


# ------------------------------ reference ---------------------------------- #

def reference_forward(x_nchw, params):
    def layer(x, w, b, g, beta):
        z = jax.lax.conv_general_dilated(
            x, w, window_strides=(1, 1), padding="SAME",
            dimension_numbers=("NCHW", "OIHW", "NCHW"))
        z = z + b[None, :, None, None]
        mean = jnp.mean(z, axis=(0, 2, 3), keepdims=True)
        var = jnp.var(z, axis=(0, 2, 3), keepdims=True)   # biased, torch train BN
        zn = (z - mean) / jnp.sqrt(var + EPS)
        return jax.nn.relu(zn * g[None, :, None, None] + beta[None, :, None, None])

    x = layer(x_nchw, params["w1"], params["b1"], params["g1"], params["beta1"])
    x = layer(x, params["w2"], params["b2"], params["g2"], params["beta2"])
    return x


if __name__ == "__main__":
    key = jax.random.PRNGKey(0)
    kx, kp = jax.random.split(key)
    N, CIN, H, W = 2, 4, 16, 16
    COUT = 8
    x = jax.random.normal(kx, (N, CIN, H, W), jnp.float32)   # PyTorch NCHW input
    params = init_params(kp, CIN, COUT)

    out = jax.block_until_ready(base_conv2d_forward(x, params))
    ref = jax.block_until_ready(reference_forward(x, params))
    assert out.shape == (N, COUT, H, W) and out.dtype == jnp.float32
    np.testing.assert_allclose(np.asarray(out), np.asarray(ref),
                               rtol=1e-4, atol=1e-4)
    print("KERNEL_OK")
</pallas_src>

<mosaic_0001>
module attributes {stable_mosaic.version = 11 : i64} {
  func.func @kernel(%arg0: i32, %arg1: memref<1x4x256xf32, #tpu.memory_space<vmem>>, %arg2: memref<36x256xf32, #tpu.memory_space<vmem>>, %arg3: memref<8x36xf32, #tpu.memory_space<vmem>>, %arg4: memref<1x8x256xf32, #tpu.memory_space<vmem>>, %arg5: memref<1x8x1xf32, #tpu.memory_space<vmem>>, %arg6: memref<1x8x1xf32, #tpu.memory_space<vmem>>) attributes {dimension_semantics = [#tpu.dimension_semantics<parallel>], iteration_bounds = array<i64: 2>, scalar_prefetch = 0 : i64, scratch_operands = 0 : i64, tpu.core_type = #tpu.core_type<tc>, window_params = [{transform_indices = @transform_0, window_bounds = array<i64: 1, 4, 256>}, {pipeline_mode = #tpu.pipeline_mode<synchronous>, transform_indices = @transform_1, window_bounds = array<i64: 36, 256>}, {pipeline_mode = #tpu.pipeline_mode<synchronous>, transform_indices = @transform_2, window_bounds = array<i64: 8, 36>}, {transform_indices = @transform_3, window_bounds = array<i64: 1, 8, 256>}, {transform_indices = @transform_4, window_bounds = array<i64: 1, 8, 1>}, {transform_indices = @transform_5, window_bounds = array<i64: 1, 8, 1>}]} {
    %c0 = arith.constant 0 : index
    %c0_0 = arith.constant 0 : index
    %c0_1 = arith.constant 0 : index
    %0 = vector.load %arg1[%c0, %c0_0, %c0_1] : memref<1x4x256xf32, #tpu.memory_space<vmem>>, vector<1x4x256xf32>
    %1 = vector.shape_cast %0 : vector<1x4x256xf32> to vector<4x256xf32>
    %cst = arith.constant 0.000000e+00 : f32
    %2 = vector.broadcast %cst : f32 to vector<4x17xf32>
    %3 = vector.extract_strided_slice %1 {offsets = [0, 0], sizes = [4, 239], strides = [1, 1]} : vector<4x256xf32> to vector<4x239xf32>
    %4 = tpu.concatenate %2, %3 in 1 : vector<4x17xf32>, vector<4x239xf32> -> vector<4x256xf32>
    %cst_2 = arith.constant 0.000000e+00 : f32
    %5 = vector.broadcast %cst_2 : f32 to vector<4x16xf32>
    %6 = vector.extract_strided_slice %1 {offsets = [0, 0], sizes = [4, 240], strides = [1, 1]} : vector<4x256xf32> to vector<4x240xf32>
    %7 = tpu.concatenate %5, %6 in 1 : vector<4x16xf32>, vector<4x240xf32> -> vector<4x256xf32>
    %cst_3 = arith.constant 0.000000e+00 : f32
    %8 = vector.broadcast %cst_3 : f32 to vector<4x15xf32>
    %9 = vector.extract_strided_slice %1 {offsets = [0, 0], sizes = [4, 241], strides = [1, 1]} : vector<4x256xf32> to vector<4x241xf32>
    %10 = tpu.concatenate %8, %9 in 1 : vector<4x15xf32>, vector<4x241xf32> -> vector<4x256xf32>
    %cst_4 = arith.constant 0.000000e+00 : f32
    %11 = vector.broadcast %cst_4 : f32 to vector<4x1xf32>
    %12 = vector.extract_strided_slice %1 {offsets = [0, 0], sizes = [4, 255], strides = [1, 1]} : vector<4x256xf32> to vector<4x255xf32>
    %13 = tpu.concatenate %11, %12 in 1 : vector<4x1xf32>, vector<4x255xf32> -> vector<4x256xf32>
    %cst_5 = arith.constant 0.000000e+00 : f32
    %14 = vector.broadcast %cst_5 : f32 to vector<4x1xf32>
    %15 = vector.extract_strided_slice %1 {offsets = [0, 1], sizes = [4, 255], strides = [1, 1]} : vector<4x256xf32> to vector<4x255xf32>
    %16 = tpu.concatenate %15, %14 in 1 : vector<4x255xf32>, vector<4x1xf32> -> vector<4x256xf32>
    %cst_6 = arith.constant 0.000000e+00 : f32
    %17 = vector.broadcast %cst_6 : f32 to vector<4x15xf32>
    %18 = vector.extract_strided_slice %1 {offsets = [0, 15], sizes = [4, 241], strides = [1, 1]} : vector<4x256xf32> to vector<4x241xf32>
    %19 = tpu.concatenate %18, %17 in 1 : vector<4x241xf32>, vector<4x15xf32> -> vector<4x256xf32>
    %cst_7 = arith.constant 0.000000e+00 : f32
    %20 = vector.broadcast %cst_7 : f32 to vector<4x16xf32>
    %21 = vector.extract_strided_slice %1 {offsets = [0, 16], sizes = [4, 240], strides = [1, 1]} : vector<4x256xf32> to vector<4x240xf32>
    %22 = tpu.concatenate %21, %20 in 1 : vector<4x240xf32>, vector<4x16xf32> -> vector<4x256xf32>
    %cst_8 = arith.constant 0.000000e+00 : f32
    %23 = vector.broadcast %cst_8 : f32 to vector<4x17xf32>
    %24 = vector.extract_strided_slice %1 {offsets = [0, 17], sizes = [4, 239], strides = [1, 1]} : vector<4x256xf32> to vector<4x239xf32>
    %25 = tpu.concatenate %24, %23 in 1 : vector<4x239xf32>, vector<4x17xf32> -> vector<4x256xf32>
    %26 = tpu.concatenate %4, %7, %10, %13, %1, %16, %19, %22, %25 in 0 : vector<4x256xf32>, vector<4x256xf32>, vector<4x256xf32>, vector<4x256xf32>, vector<4x256xf32>, vector<4x256xf32>, vector<4x256xf32>, vector<4x256xf32>, vector<4x256xf32> -> vector<36x256xf32>
    %c0_9 = arith.constant 0 : index
    %c0_10 = arith.constant 0 : index
    %27 = vector.load %arg2[%c0_9, %c0_10] : memref<36x256xf32, #tpu.memory_space<vmem>>, vector<36x256xf32>
    %28 = arith.mulf %26, %27 : vector<36x256xf32>
    %c0_11 = arith.constant 0 : index
    %c0_12 = arith.constant 0 : index
    %29 = vector.load %arg3[%c0_11, %c0_12] : memref<8x36xf32, #tpu.memory_space<vmem>>, vector<8x36xf32>
    %cst_13 = arith.constant dense<0.000000e+00> : vector<8x256xf32>
    %30 = tpu.matmul %29, %28, %cst_13 {dimension_numbers = #tpu.dot_dimension_numbers<[1], [0], [0], [1], [0, 0, 1, 1], [], []>} : vector<8x36xf32>, vector<36x256xf32>, vector<8x256xf32> -> vector<8x256xf32>
    %c0_14 = arith.constant 0 : index
    %c0_15 = arith.constant 0 : index
    %c0_16 = arith.constant 0 : index
    %31 = vector.load %arg4[%c0_14, %c0_15, %c0_16] : memref<1x8x256xf32, #tpu.memory_space<vmem>>, vector<1x8x256xf32>
    %32 = vector.shape_cast %31 : vector<1x8x256xf32> to vector<8x256xf32>
    %33 = vector.shape_cast %30 : vector<8x256xf32> to vector<1x8x256xf32>
    tpu.vector_store %arg4[%c0_14, %c0_15, %c0_16], %33 {strides = array<i32>} : memref<1x8x256xf32, #tpu.memory_space<vmem>>, vector<1x8x256xf32>,
    %cst_17 = arith.constant dense<0.000000e+00> : vector<8xf32>
    %34 = vector.multi_reduction <add>, %30, %cst_17 [1] : vector<8x256xf32> to vector<8xf32>
    %35 = vector.shape_cast %34 : vector<8xf32> to vector<8x1xf32>
    %c0_18 = arith.constant 0 : index
    %c0_19 = arith.constant 0 : index
    %c0_20 = arith.constant 0 : index
    %36 = vector.load %arg5[%c0_18, %c0_19, %c0_20] : memref<1x8x1xf32, #tpu.memory_space<vmem>>, vector<1x8x1xf32>
    %37 = vector.shape_cast %36 : vector<1x8x1xf32> to vector<8x1xf32>
    %38 = vector.shape_cast %35 : vector<8x1xf32> to vector<1x8x1xf32>
    tpu.vector_store %arg5[%c0_18, %c0_19, %c0_20], %38 {strides = array<i32>} : memref<1x8x1xf32, #tpu.memory_space<vmem>>, vector<1x8x1xf32>,
    %cst_21 = arith.constant 3.906250e-03 : f32
    %39 = vector.broadcast %cst_21 : f32 to vector<8x1xf32>
    %40 = arith.mulf %35, %39 : vector<8x1xf32>
    %41 = vector.broadcast %40 : vector<8x1xf32> to vector<8x256xf32>
    %42 = arith.subf %30, %41 : vector<8x256xf32>
    %43 = arith.mulf %42, %42 : vector<8x256xf32>
    %cst_22 = arith.constant dense<0.000000e+00> : vector<8xf32>
    %44 = vector.multi_reduction <add>, %43, %cst_22 [1] : vector<8x256xf32> to vector<8xf32>
    %45 = vector.shape_cast %44 : vector<8xf32> to vector<8x1xf32>
    %c0_23 = arith.constant 0 : index
    %c0_24 = arith.constant 0 : index
    %c0_25 = arith.constant 0 : index
    %46 = vector.load %arg6[%c0_23, %c0_24, %c0_25] : memref<1x8x1xf32, #tpu.memory_space<vmem>>, vector<1x8x1xf32>
    %47 = vector.shape_cast %46 : vector<1x8x1xf32> to vector<8x1xf32>
    %48 = vector.shape_cast %45 : vector<8x1xf32> to vector<1x8x1xf32>
    tpu.vector_store %arg6[%c0_23, %c0_24, %c0_25], %48 {strides = array<i32>} : memref<1x8x1xf32, #tpu.memory_space<vmem>>, vector<1x8x1xf32>,
    return
  }
  func.func @transform_0(%arg0: i32) -> (i32, i32, i32) {
    %c0_i32 = arith.constant 0 : i32
    %c0_i32_0 = arith.constant 0 : i32
    %c0_i32_1 = arith.constant 0 : i32
    return %arg0, %c0_i32, %c0_i32_0 : i32, i32, i32
  }
  func.func @transform_1(%arg0: i32) -> (i32, i32) {
    %c0_i32 = arith.constant 0 : i32
    %c0_i32_0 = arith.constant 0 : i32
    %c0_i32_1 = arith.constant 0 : i32
    return %c0_i32, %c0_i32_0 : i32, i32
  }
  func.func @transform_2(%arg0: i32) -> (i32, i32) {
    %c0_i32 = arith.constant 0 : i32
    %c0_i32_0 = arith.constant 0 : i32
    %c0_i32_1 = arith.constant 0 : i32
    return %c0_i32, %c0_i32_0 : i32, i32
  }
  func.func @transform_3(%arg0: i32) -> (i32, i32, i32) {
    %c0_i32 = arith.constant 0 : i32
    %c0_i32_0 = arith.constant 0 : i32
    %c0_i32_1 = arith.constant 0 : i32
    return %arg0, %c0_i32, %c0_i32_0 : i32, i32, i32
  }
  func.func @transform_4(%arg0: i32) -> (i32, i32, i32) {
    %c0_i32 = arith.constant 0 : i32
    %c0_i32_0 = arith.constant 0 : i32
    %c0_i32_1 = arith.constant 0 : i32
    return %arg0, %c0_i32, %c0_i32_0 : i32, i32, i32
  }
  func.func @transform_5(%arg0: i32) -> (i32, i32, i32) {
    %c0_i32 = arith.constant 0 : i32
    %c0_i32_0 = arith.constant 0 : i32
    %c0_i32_1 = arith.constant 0 : i32
    return %arg0, %c0_i32, %c0_i32_0 : i32, i32, i32
  }
}

module attributes {stable_mosaic.version = 11 : i64} {
  func.func @kernel(%arg0: i32, %arg1: memref<1x8x256xf32, #tpu.memory_space<vmem>>, %arg2: memref<8x1xf32, #tpu.memory_space<vmem>>, %arg3: memref<8x1xf32, #tpu.memory_space<vmem>>, %arg4: memref<72x256xf32, #tpu.memory_space<vmem>>, %arg5: memref<8x72xf32, #tpu.memory_space<vmem>>, %arg6: memref<1x8x256xf32, #tpu.memory_space<vmem>>, %arg7: memref<1x8x1xf32, #tpu.memory_space<vmem>>, %arg8: memref<1x8x1xf32, #tpu.memory_space<vmem>>) attributes {dimension_semantics = [#tpu.dimension_semantics<parallel>], iteration_bounds = array<i64: 2>, scalar_prefetch = 0 : i64, scratch_operands = 0 : i64, tpu.core_type = #tpu.core_type<tc>, window_params = [{transform_indices = @transform_0, window_bounds = array<i64: 1, 8, 256>}, {pipeline_mode = #tpu.pipeline_mode<synchronous>, transform_indices = @transform_1, window_bounds = array<i64: 8, 1>}, {pipeline_mode = #tpu.pipeline_mode<synchronous>, transform_indices = @transform_2, window_bounds = array<i64: 8, 1>}, {pipeline_mode = #tpu.pipeline_mode<synchronous>, transform_indices = @transform_3, window_bounds = array<i64: 72, 256>}, {pipeline_mode = #tpu.pipeline_mode<synchronous>, transform_indices = @transform_4, window_bounds = array<i64: 8, 72>}, {transform_indices = @transform_5, window_bounds = array<i64: 1, 8, 256>}, {transform_indices = @transform_6, window_bounds = array<i64: 1, 8, 1>}, {transform_indices = @transform_7, window_bounds = array<i64: 1, 8, 1>}]} {
    %c0 = arith.constant 0 : index
    %c0_0 = arith.constant 0 : index
    %c0_1 = arith.constant 0 : index
    %0 = vector.load %arg1[%c0, %c0_0, %c0_1] : memref<1x8x256xf32, #tpu.memory_space<vmem>>, vector<1x8x256xf32>
    %1 = vector.shape_cast %0 : vector<1x8x256xf32> to vector<8x256xf32>
    %c0_2 = arith.constant 0 : index
    %c0_3 = arith.constant 0 : index
    %2 = vector.load %arg2[%c0_2, %c0_3] : memref<8x1xf32, #tpu.memory_space<vmem>>, vector<8x1xf32>
    %3 = vector.broadcast %2 : vector<8x1xf32> to vector<8x256xf32>
    %4 = arith.mulf %1, %3 : vector<8x256xf32>
    %c0_4 = arith.constant 0 : index
    %c0_5 = arith.constant 0 : index
    %5 = vector.load %arg3[%c0_4, %c0_5] : memref<8x1xf32, #tpu.memory_space<vmem>>, vector<8x1xf32>
    %6 = vector.broadcast %5 : vector<8x1xf32> to vector<8x256xf32>
    %7 = arith.addf %4, %6 : vector<8x256xf32>
    %cst = arith.constant 0.000000e+00 : f32
    %8 = vector.broadcast %cst : f32 to vector<8x256xf32>
    %9 = arith.maximumf %7, %8 : vector<8x256xf32>
    %cst_6 = arith.constant 0.000000e+00 : f32
    %10 = vector.broadcast %cst_6 : f32 to vector<8x17xf32>
    %11 = vector.extract_strided_slice %9 {offsets = [0, 0], sizes = [8, 239], strides = [1, 1]} : vector<8x256xf32> to vector<8x239xf32>
    %12 = tpu.concatenate %10, %11 in 1 : vector<8x17xf32>, vector<8x239xf32> -> vector<8x256xf32>
    %cst_7 = arith.constant 0.000000e+00 : f32
    %13 = vector.broadcast %cst_7 : f32 to vector<8x16xf32>
    %14 = vector.extract_strided_slice %9 {offsets = [0, 0], sizes = [8, 240], strides = [1, 1]} : vector<8x256xf32> to vector<8x240xf32>
    %15 = tpu.concatenate %13, %14 in 1 : vector<8x16xf32>, vector<8x240xf32> -> vector<8x256xf32>
    %cst_8 = arith.constant 0.000000e+00 : f32
    %16 = vector.broadcast %cst_8 : f32 to vector<8x15xf32>
    %17 = vector.extract_strided_slice %9 {offsets = [0, 0], sizes = [8, 241], strides = [1, 1]} : vector<8x256xf32> to vector<8x241xf32>
    %18 = tpu.concatenate %16, %17 in 1 : vector<8x15xf32>, vector<8x241xf32> -> vector<8x256xf32>
    %cst_9 = arith.constant 0.000000e+00 : f32
    %19 = vector.broadcast %cst_9 : f32 to vector<8x1xf32>
    %20 = vector.extract_strided_slice %9 {offsets = [0, 0], sizes = [8, 255], strides = [1, 1]} : vector<8x256xf32> to vector<8x255xf32>
    %21 = tpu.concatenate %19, %20 in 1 : vector<8x1xf32>, vector<8x255xf32> -> vector<8x256xf32>
    %cst_10 = arith.constant 0.000000e+00 : f32
    %22 = vector.broadcast %cst_10 : f32 to vector<8x1xf32>
    %23 = vector.extract_strided_slice %9 {offsets = [0, 1], sizes = [8, 255], strides = [1, 1]} : vector<8x256xf32> to vector<8x255xf32>
    %24 = tpu.concatenate %23, %22 in 1 : vector<8x255xf32>, vector<8x1xf32> -> vector<8x256xf32>
    %cst_11 = arith.constant 0.000000e+00 : f32
    %25 = vector.broadcast %cst_11 : f32 to vector<8x15xf32>
    %26 = vector.extract_strided_slice %9 {offsets = [0, 15], sizes = [8, 241], strides = [1, 1]} : vector<8x256xf32> to vector<8x241xf32>
    %27 = tpu.concatenate %26, %25 in 1 : vector<8x241xf32>, vector<8x15xf32> -> vector<8x256xf32>
    %cst_12 = arith.constant 0.000000e+00 : f32
    %28 = vector.broadcast %cst_12 : f32 to vector<8x16xf32>
    %29 = vector.extract_strided_slice %9 {offsets = [0, 16], sizes = [8, 240], strides = [1, 1]} : vector<8x256xf32> to vector<8x240xf32>
    %30 = tpu.concatenate %29, %28 in 1 : vector<8x240xf32>, vector<8x16xf32> -> vector<8x256xf32>
    %cst_13 = arith.constant 0.000000e+00 : f32
    %31 = vector.broadcast %cst_13 : f32 to vector<8x17xf32>
    %32 = vector.extract_strided_slice %9 {offsets = [0, 17], sizes = [8, 239], strides = [1, 1]} : vector<8x256xf32> to vector<8x239xf32>
    %33 = tpu.concatenate %32, %31 in 1 : vector<8x239xf32>, vector<8x17xf32> -> vector<8x256xf32>
    %34 = tpu.concatenate %12, %15, %18, %21, %9, %24, %27, %30, %33 in 0 : vector<8x256xf32>, vector<8x256xf32>, vector<8x256xf32>, vector<8x256xf32>, vector<8x256xf32>, vector<8x256xf32>, vector<8x256xf32>, vector<8x256xf32>, vector<8x256xf32> -> vector<72x256xf32>
    %c0_14 = arith.constant 0 : index
    %c0_15 = arith.constant 0 : index
    %35 = vector.load %arg4[%c0_14, %c0_15] : memref<72x256xf32, #tpu.memory_space<vmem>>, vector<72x256xf32>
    %36 = arith.mulf %34, %35 : vector<72x256xf32>
    %c0_16 = arith.constant 0 : index
    %c0_17 = arith.constant 0 : index
    %37 = vector.load %arg5[%c0_16, %c0_17] : memref<8x72xf32, #tpu.memory_space<vmem>>, vector<8x72xf32>
    %cst_18 = arith.constant dense<0.000000e+00> : vector<8x256xf32>
    %38 = tpu.matmul %37, %36, %cst_18 {dimension_numbers = #tpu.dot_dimension_numbers<[1], [0], [0], [1], [0, 0, 1, 1], [], []>} : vector<8x72xf32>, vector<72x256xf32>, vector<8x256xf32> -> vector<8x256xf32>
    %c0_19 = arith.constant 0 : index
    %c0_20 = arith.constant 0 : index
    %c0_21 = arith.constant 0 : index
    %39 = vector.load %arg6[%c0_19, %c0_20, %c0_21] : memref<1x8x256xf32, #tpu.memory_space<vmem>>, vector<1x8x256xf32>
    %40 = vector.shape_cast %39 : vector<1x8x256xf32> to vector<8x256xf32>
    %41 = vector.shape_cast %38 : vector<8x256xf32> to vector<1x8x256xf32>
    tpu.vector_store %arg6[%c0_19, %c0_20, %c0_21], %41 {strides = array<i32>} : memref<1x8x256xf32, #tpu.memory_space<vmem>>, vector<1x8x256xf32>,
    %cst_22 = arith.constant dense<0.000000e+00> : vector<8xf32>
    %42 = vector.multi_reduction <add>, %38, %cst_22 [1] : vector<8x256xf32> to vector<8xf32>
    %43 = vector.shape_cast %42 : vector<8xf32> to vector<8x1xf32>
    %c0_23 = arith.constant 0 : index
    %c0_24 = arith.constant 0 : index
    %c0_25 = arith.constant 0 : index
    %44 = vector.load %arg7[%c0_23, %c0_24, %c0_25] : memref<1x8x1xf32, #tpu.memory_space<vmem>>, vector<1x8x1xf32>
    %45 = vector.shape_cast %44 : vector<1x8x1xf32> to vector<8x1xf32>
    %46 = vector.shape_cast %43 : vector<8x1xf32> to vector<1x8x1xf32>
    tpu.vector_store %arg7[%c0_23, %c0_24, %c0_25], %46 {strides = array<i32>} : memref<1x8x1xf32, #tpu.memory_space<vmem>>, vector<1x8x1xf32>,
    %cst_26 = arith.constant 3.906250e-03 : f32
    %47 = vector.broadcast %cst_26 : f32 to vector<8x1xf32>
    %48 = arith.mulf %43, %47 : vector<8x1xf32>
    %49 = vector.broadcast %48 : vector<8x1xf32> to vector<8x256xf32>
    %50 = arith.subf %38, %49 : vector<8x256xf32>
    %51 = arith.mulf %50, %50 : vector<8x256xf32>
    %cst_27 = arith.constant dense<0.000000e+00> : vector<8xf32>
    %52 = vector.multi_reduction <add>, %51, %cst_27 [1] : vector<8x256xf32> to vector<8xf32>
    %53 = vector.shape_cast %52 : vector<8xf32> to vector<8x1xf32>
    %c0_28 = arith.constant 0 : index
    %c0_29 = arith.constant 0 : index
    %c0_30 = arith.constant 0 : index
    %54 = vector.load %arg8[%c0_28, %c0_29, %c0_30] : memref<1x8x1xf32, #tpu.memory_space<vmem>>, vector<1x8x1xf32>
    %55 = vector.shape_cast %54 : vector<1x8x1xf32> to vector<8x1xf32>
    %56 = vector.shape_cast %53 : vector<8x1xf32> to vector<1x8x1xf32>
    tpu.vector_store %arg8[%c0_28, %c0_29, %c0_30], %56 {strides = array<i32>} : memref<1x8x1xf32, #tpu.memory_space<vmem>>, vector<1x8x1xf32>,
    return
  }
  func.func @transform_0(%arg0: i32) -> (i32, i32, i32) {
    %c0_i32 = arith.constant 0 : i32
    %c0_i32_0 = arith.constant 0 : i32
    %c0_i32_1 = arith.constant 0 : i32
    return %arg0, %c0_i32, %c0_i32_0 : i32, i32, i32
  }
  func.func @transform_1(%arg0: i32) -> (i32, i32) {
    %c0_i32 = arith.constant 0 : i32
    %c0_i32_0 = arith.constant 0 : i32
    %c0_i32_1 = arith.constant 0 : i32
    return %c0_i32, %c0_i32_0 : i32, i32
  }
  func.func @transform_2(%arg0: i32) -> (i32, i32) {
    %c0_i32 = arith.constant 0 : i32
    %c0_i32_0 = arith.constant 0 : i32
    %c0_i32_1 = arith.constant 0 : i32
    return %c0_i32, %c0_i32_0 : i32, i32
  }
  func.func @transform_3(%arg0: i32) -> (i32, i32) {
    %c0_i32 = arith.constant 0 : i32
    %c0_i32_0 = arith.constant 0 : i32
    %c0_i32_1 = arith.constant 0 : i32
    return %c0_i32, %c0_i32_0 : i32, i32
  }
  func.func @transform_4(%arg0: i32) -> (i32, i32) {
    %c0_i32 = arith.constant 0 : i32
    %c0_i32_0 = arith.constant 0 : i32
    %c0_i32_1 = arith.constant 0 : i32
    return %c0_i32, %c0_i32_0 : i32, i32
  }
  func.func @transform_5(%arg0: i32) -> (i32, i32, i32) {
    %c0_i32 = arith.constant 0 : i32
    %c0_i32_0 = arith.constant 0 : i32
    %c0_i32_1 = arith.constant 0 : i32
    return %arg0, %c0_i32, %c0_i32_0 : i32, i32, i32
  }
  func.func @transform_6(%arg0: i32) -> (i32, i32, i32) {
    %c0_i32 = arith.constant 0 : i32
    %c0_i32_0 = arith.constant 0 : i32
    %c0_i32_1 = arith.constant 0 : i32
    return %arg0, %c0_i32, %c0_i32_0 : i32, i32, i32
  }
  func.func @transform_7(%arg0: i32) -> (i32, i32, i32) {
    %c0_i32 = arith.constant 0 : i32
    %c0_i32_0 = arith.constant 0 : i32
    %c0_i32_1 = arith.constant 0 : i32
    return %arg0, %c0_i32, %c0_i32_0 : i32, i32, i32
  }
}

</mosaic_0001>

<llo_original>
// kernel: base_conv2d_forward.3
$region0: #{base_conv2d_forward.3}
  #allocation0 [shape = 'u32[]', space=smem, size = 0x4, offset = 0x4, fixed_abs, tag = 'smem constant byte address 0x4 - core index']
  #allocation1 [shape = 'u32[72,128]{1,0:T(1,128)}', space=vmem, size = 0x9000, scoped, tag = 'internal scratch']
  %s0 = inlined_call_operand.vmem [shape: f32[2,8,256], index: 0, kind: input, shape index: {}]
  %s1 = inlined_call_operand.vmem [shape: f32[8,1], index: 1, kind: input, shape index: {}]
  %s2 = inlined_call_operand.vmem [shape: f32[8,1], index: 2, kind: input, shape index: {}]
  %s3 = inlined_call_operand.vmem [shape: f32[72,256], index: 3, kind: input, shape index: {}]
  %s4 = inlined_call_operand.vmem [shape: f32[8,72], index: 4, kind: input, shape index: {}]
  %s5 = inlined_call_operand.vmem [shape: f32[2,8,256], index: 5, kind: output, shape index: {0}]
  %s6 = inlined_call_operand.vmem [shape: f32[2,8,1], index: 6, kind: output, shape index: {1}]
  %s7 = inlined_call_operand.vmem [shape: f32[2,8,1], index: 7, kind: output, shape index: {2}]
  %8 = xla_tuple %s5, %s6, %s7
  %s9 = sld [smem:[#allocation0]]
  $region69: #{base_conv2d_forward.3} parent=0
    _
  %s11 = ssub.s32 1, %s9
  %s12 = scalar_select 0, %s11, %s9
  loop: start=0, step=1, limit=4
  $region2: #{base_conv2d_forward.3} parent=0 // loop_pre_header
    _
  $region3: #{base_conv2d_forward.3} parent=0 // loop_header
    %s14 = sphi 0, %s18
    %p15 = scmp.ge.s32.totalorder %s14, 4
    %s24 = sphi 0, %s26
    %s27 = sphi 0, %s24
    %s28 = sphi 0, %s27
    %s44 = sphi 0, %s28
    %s48 = sphi 0, %s48
    %s50 = sphi 0, %s48
    %s51 = sphi 0, %s50
    %s65 = sphi 0, %s51
    %s69 = sphi 0, %s69
    %s71 = sphi 0, %s69
    %s72 = sphi 0, %s71
    %s86 = sphi 0, %s72
    %s90 = sphi 0, %s90
    %s92 = sphi 0, %s90
    %s93 = sphi 0, %s92
    %s107 = sphi 0, %s93
    %s111 = sphi 0, %s111
    %s113 = sphi 0, %s111
    %s114 = sphi 0, %s113
    %s128 = sphi 0, %s114
    %s134 = sphi 0, %s136
    %s137 = sphi 0, %s134
    %s138 = sphi 0, %s137
    %s154 = sphi 0, %s138
    %s160 = sphi 0, %s162
    %s163 = sphi 0, %s160
    %s164 = sphi 0, %s163
    %s180 = sphi 0, %s164
    %s186 = sphi 0, %s188
    %s189 = sphi 0, %s186
    %s190 = sphi 0, %s189
    %s206 = sphi 0, %s190
  $region4: #{base_conv2d_forward.3} parent=0 // loop_header_branch
    %17 = sbr.rel (%p15) target = $region8
  $region5: #{base_conv2d_forward.3} parent=0 // loop_body
    %s19 = ssub.s32 %s14, 1
    %s20 = ssub.s32 %s14, 2
    %s21 = sadd.s32 %s14, 1
    %s22 = ssub.s32 %s14, %s21
    %p23 = scmp.eq.s32.totalorder %s22, 0
    %s25 = sadd.s32 %s24, 1
    %s26 = scalar_select %p23, %s24, %s25
    %p29 = pneg %p23
    %p30 = scmp.eq.s32.totalorder %s14, 1
    %p31 = por %p29, %p30
    %p32 = scmp.ne.s32.totalorder %s24, %s27
    %p33 = scmp.eq.s32.totalorder %s14, 0
    %p34 = por %p32, %p33
    %p35 = scmp.ne.s32.totalorder %s24, %s27
    %p36 = scmp.eq.s32.totalorder %s19, 1
    %p37 = por %p35, %p36
    %p38 = scmp.ne.s32.totalorder %s27, %s28
    %p39 = scmp.eq.s32.totalorder %s19, 0
    %p40 = por %p38, %p39
    %p41 = scmp.ne.s32.totalorder %s27, %s28
    %p42 = scmp.eq.s32.totalorder %s20, 1
    %p43 = por %p41, %p42
    %p45 = scmp.ne.s32.totalorder %s28, %s44
    %p46 = scmp.eq.s32.totalorder %s20, 0
    %p47 = por %p45, %p46
    %s49 = sadd.s32 %s48, 1
    %p52 = scmp.eq.s32.totalorder %s14, 1
    %p53 = scmp.ne.s32.totalorder %s48, %s50
    %p54 = scmp.eq.s32.totalorder %s14, 0
    %p55 = por %p53, %p54
    %p56 = scmp.ne.s32.totalorder %s48, %s50
    %p57 = scmp.eq.s32.totalorder %s19, 1
    %p58 = por %p56, %p57
    %p59 = scmp.ne.s32.totalorder %s50, %s51
    %p60 = scmp.eq.s32.totalorder %s19, 0
    %p61 = por %p59, %p60
    %p62 = scmp.ne.s32.totalorder %s50, %s51
    %p63 = scmp.eq.s32.totalorder %s20, 1
    %p64 = por %p62, %p63
    %p66 = scmp.ne.s32.totalorder %s51, %s65
    %p67 = scmp.eq.s32.totalorder %s20, 0
    %p68 = por %p66, %p67
    %s70 = sadd.s32 %s69, 1
    %p73 = scmp.eq.s32.totalorder %s14, 1
    %p74 = scmp.ne.s32.totalorder %s69, %s71
    %p75 = scmp.eq.s32.totalorder %s14, 0
    %p76 = por %p74, %p75
    %p77 = scmp.ne.s32.totalorder %s69, %s71
    %p78 = scmp.eq.s32.totalorder %s19, 1
    %p79 = por %p77, %p78
    %p80 = scmp.ne.s32.totalorder %s71, %s72
    %p81 = scmp.eq.s32.totalorder %s19, 0
    %p82 = por %p80, %p81
    %p83 = scmp.ne.s32.totalorder %s71, %s72
    %p84 = scmp.eq.s32.totalorder %s20, 1
    %p85 = por %p83, %p84
    %p87 = scmp.ne.s32.totalorder %s72, %s86
    %p88 = scmp.eq.s32.totalorder %s20, 0
    %p89 = por %p87, %p88
    %s91 = sadd.s32 %s90, 1
    %p94 = scmp.eq.s32.totalorder %s14, 1
    %p95 = scmp.ne.s32.totalorder %s90, %s92
    %p96 = scmp.eq.s32.totalorder %s14, 0
    %p97 = por %p95, %p96
    %p98 = scmp.ne.s32.totalorder %s90, %s92
    %p99 = scmp.eq.s32.totalorder %s19, 1
    %p100 = por %p98, %p99
    %p101 = scmp.ne.s32.totalorder %s92, %s93
    %p102 = scmp.eq.s32.totalorder %s19, 0
    %p103 = por %p101, %p102
    %p104 = scmp.ne.s32.totalorder %s92, %s93
    %p105 = scmp.eq.s32.totalorder %s20, 1
    %p106 = por %p104, %p105
    %p108 = scmp.ne.s32.totalorder %s93, %s107
    %p109 = scmp.eq.s32.totalorder %s20, 0
    %p110 = por %p108, %p109
    %s112 = sadd.s32 %s111, 1
    %p115 = scmp.eq.s32.totalorder %s14, 1
    %p116 = scmp.ne.s32.totalorder %s111, %s113
    %p117 = scmp.eq.s32.totalorder %s14, 0
    %p118 = por %p116, %p117
    %p119 = scmp.ne.s32.totalorder %s111, %s113
    %p120 = scmp.eq.s32.totalorder %s19, 1
    %p121 = por %p119, %p120
    %p122 = scmp.ne.s32.totalorder %s113, %s114
    %p123 = scmp.eq.s32.totalorder %s19, 0
    %p124 = por %p122, %p123
    %p125 = scmp.ne.s32.totalorder %s113, %s114
    %p126 = scmp.eq.s32.totalorder %s20, 1
    %p127 = por %p125, %p126
    %p129 = scmp.ne.s32.totalorder %s114, %s128
    %p130 = scmp.eq.s32.totalorder %s20, 0
    %p131 = por %p129, %p130
    %s132 = ssub.s32 %s14, %s21
    %p133 = scmp.eq.s32.totalorder %s132, 0
    %s135 = sadd.s32 %s134, 1
    %s136 = scalar_select %p133, %s134, %s135
    %p139 = pneg %p133
    %p140 = scmp.eq.s32.totalorder %s14, 1
    %p141 = por %p139, %p140
    %p142 = scmp.ne.s32.totalorder %s134, %s137
    %p143 = scmp.eq.s32.totalorder %s14, 0
    %p144 = por %p142, %p143
    %p145 = scmp.ne.s32.totalorder %s134, %s137
    %p146 = scmp.eq.s32.totalorder %s19, 1
    %p147 = por %p145, %p146
    %p148 = scmp.ne.s32.totalorder %s137, %s138
    %p149 = scmp.eq.s32.totalorder %s19, 0
    %p150 = por %p148, %p149
    %p151 = scmp.ne.s32.totalorder %s137, %s138
    %p152 = scmp.eq.s32.totalorder %s20, 1
    %p153 = por %p151, %p152
    %p155 = scmp.ne.s32.totalorder %s138, %s154
    %p156 = scmp.eq.s32.totalorder %s20, 0
    %p157 = por %p155, %p156
    %s158 = ssub.s32 %s14, %s21
    %p159 = scmp.eq.s32.totalorder %s158, 0
    %s161 = sadd.s32 %s160, 1
    %s162 = scalar_select %p159, %s160, %s161
    %p165 = pneg %p159
    %p166 = scmp.eq.s32.totalorder %s14, 1
    %p167 = por %p165, %p166
    %p168 = scmp.ne.s32.totalorder %s160, %s163
    %p169 = scmp.eq.s32.totalorder %s14, 0
    %p170 = por %p168, %p169
    %p171 = scmp.ne.s32.totalorder %s160, %s163
    %p172 = scmp.eq.s32.totalorder %s19, 1
    %p173 = por %p171, %p172
    %p174 = scmp.ne.s32.totalorder %s163, %s164
    %p175 = scmp.eq.s32.totalorder %s19, 0
    %p176 = por %p174, %p175
    %p177 = scmp.ne.s32.totalorder %s163, %s164
    %p178 = scmp.eq.s32.totalorder %s20, 1
    %p179 = por %p177, %p178
    %p181 = scmp.ne.s32.totalorder %s164, %s180
    %p182 = scmp.eq.s32.totalorder %s20, 0
    %p183 = por %p181, %p182
    %s184 = ssub.s32 %s14, %s21
    %p185 = scmp.eq.s32.totalorder %s184, 0
    %s187 = sadd.s32 %s186, 1
    %s188 = scalar_select %p185, %s186, %s187
    %p191 = pneg %p185
    %p192 = scmp.eq.s32.totalorder %s14, 1
    %p193 = por %p191, %p192
    %p194 = scmp.ne.s32.totalorder %s186, %s189
    %p195 = scmp.eq.s32.totalorder %s14, 0
    %p196 = por %p194, %p195
    %p197 = scmp.ne.s32.totalorder %s186, %s189
    %p198 = scmp.eq.s32.totalorder %s19, 1
    %p199 = por %p197, %p198
    %p200 = scmp.ne.s32.totalorder %s189, %s190
    %p201 = scmp.eq.s32.totalorder %s19, 0
    %p202 = por %p200, %p201
    %p203 = scmp.ne.s32.totalorder %s189, %s190
    %p204 = scmp.eq.s32.totalorder %s20, 1
    %p205 = por %p203, %p204
    %p207 = scmp.ne.s32.totalorder %s190, %s206
    %p208 = scmp.eq.s32.totalorder %s20, 0
    %p209 = por %p207, %p208
    %p210 = scmp.le.s32.totalorder 1, %s14
    %p211 = scmp.lt.s32.totalorder %s14, 3
    %p212 = pnand %p210, %p211
    %p213 = pneg %p212
    // Predicated region
    $region9: #{base_conv2d_forward.3} parent=5 // pred_check
      _
    $region10: #{base_conv2d_forward.3} parent=5 // pred_check_branch
      %215 = sbr.rel (%p212) target = $region12
    $region11: #{base_conv2d_forward.3} parent=5 // pred_region
      %s216 = ssub.s32 %s14, 1
      // Predicated region
      $region13: #{base_conv2d_forward.3} parent=11 // pred_check
        %p217 = pneg %p61
      $region14: #{base_conv2d_forward.3} parent=11 // pred_check_branch
        %219 = sbr.rel (%p217) target = $region16
      $region15: #{base_conv2d_forward.3} parent=11 // pred_region
        _
      $region16: #{base_conv2d_forward.3} parent=11 // pred_fallthru
        _
      // Predicated region
      $region17: #{base_conv2d_forward.3} parent=11 // pred_check
        %p220 = pneg %p82
      $region18: #{base_conv2d_forward.3} parent=11 // pred_check_branch
        %222 = sbr.rel (%p220) target = $region20
      $region19: #{base_conv2d_forward.3} parent=11 // pred_region
        _
      $region20: #{base_conv2d_forward.3} parent=11 // pred_fallthru
        _
      // Predicated region
      $region21: #{base_conv2d_forward.3} parent=11 // pred_check
        %p223 = pneg %p103
      $region22: #{base_conv2d_forward.3} parent=11 // pred_check_branch
        %225 = sbr.rel (%p223) target = $region24
      $region23: #{base_conv2d_forward.3} parent=11 // pred_region
        _
      $region24: #{base_conv2d_forward.3} parent=11 // pred_fallthru
        _
      // Predicated region
      $region25: #{base_conv2d_forward.3} parent=11 // pred_check
        %p226 = pneg %p124
      $region26: #{base_conv2d_forward.3} parent=11 // pred_check_branch
        %228 = sbr.rel (%p226) target = $region28
      $region27: #{base_conv2d_forward.3} parent=11 // pred_region
        _
      $region28: #{base_conv2d_forward.3} parent=11 // pred_fallthru
        _
    $region12: #{base_conv2d_forward.3} parent=5 // pred_fallthru
      _
    %p229 = scmp.lt.s32.totalorder %s14, 2
    // Predicated region
    $region29: #{base_conv2d_forward.3} parent=5 // pred_check
      %p230 = pneg %p229
    $region30: #{base_conv2d_forward.3} parent=5 // pred_check_branch
      %232 = sbr.rel (%p230) target = $region32
    $region31: #{base_conv2d_forward.3} parent=5 // pred_region
      // Predicated region
      $region33: #{base_conv2d_forward.3} parent=31 // pred_check
        %p233 = pneg %p34
      $region34: #{base_conv2d_forward.3} parent=31 // pred_check_branch
        %235 = sbr.rel (%p233) target = $region36
      $region35: #{base_conv2d_forward.3} parent=31 // pred_region
        %p236 = scmp.lt.s32.totalorder %s14, 1
        %s237 = scalar_select %p236, %s14, 1
        %s238 = smul.addr %s237, 2
        %s239 = smul.addr %s238, 8
        %s240 = scalar_lea.vmem %s0, %s239
      $region36: #{base_conv2d_forward.3} parent=31 // pred_fallthru
        _
    $region32: #{base_conv2d_forward.3} parent=5 // pred_fallthru
      _
    %p241 = scmp.le.s32.totalorder 1, %s14
    %p242 = scmp.lt.s32.totalorder %s14, 3
    %p243 = pnand %p241, %p242
    %p244 = pneg %p243
    // Predicated region
    $region37: #{base_conv2d_forward.3} parent=5 // pred_check
      _
    $region38: #{base_conv2d_forward.3} parent=5 // pred_check_branch
      %246 = sbr.rel (%p243) target = $region40
    $region39: #{base_conv2d_forward.3} parent=5 // pred_region
      %s247 = ssub.s32 %s14, 1
      %p248 = scmp.lt.s32.totalorder %s19, 1
      %s249 = scalar_select %p248, %s19, 1
      %s250 = smul.addr %s249, 2
      %s251 = smul.addr %s250, 8
      %s252 = scalar_lea.vmem %s0, %s251
      %p253 = pneg %p40
      %p254 = pneg %p37
      %p255 = pneg %p61
      %p256 = pneg %p58
      %p257 = pneg %p82
      %p258 = pneg %p79
      %p259 = pneg %p103
      %p260 = pneg %p100
      %p261 = pneg %p124
      %p262 = pneg %p121
      %p263 = pneg %p150
      %p264 = pneg %p147
      %p265 = scmp.lt.s32.totalorder %s19, 1
      %s266 = scalar_select %p265, %s19, 1
      %s267 = smul.addr %s266, 2
      %s268 = smul.addr %s267, 8
      %s269 = scalar_lea.vmem %s5, %s268
      %p270 = pneg %p176
      %p271 = pneg %p173
      %p272 = scmp.lt.s32.totalorder %s19, 1
      %s273 = scalar_select %p272, %s19, 1
      %s274 = smul.addr %s273, 8
      %s275 = scalar_lea.vmem %s6, %s274
      %p276 = pneg %p202
      %p277 = pneg %p199
      %p278 = scmp.lt.s32.totalorder %s19, 1
      %s279 = scalar_select %p278, %s19, 1
      %s280 = smul.addr %s279, 8
      %s281 = scalar_lea.vmem %s7, %s280
      %p282 = scmp.lt.s32.totalorder %s19, 1
      %s283 = scalar_select %p282, %s19, 1
      %s284 = smul.addr %s283, 2
      %s285 = smul.addr %s284, 8
      %s286 = scalar_lea.vmem %s0, %s285
      %p287 = scmp.lt.s32.totalorder %s19, 1
      %s288 = scalar_select %p287, %s19, 1
      %s289 = smul.addr %s288, 2
      %s290 = smul.addr %s289, 8
      %s291 = scalar_lea.vmem %s5, %s290
      %p292 = scmp.lt.s32.totalorder %s19, 1
      %s293 = scalar_select %p292, %s19, 1
      %s294 = smul.addr %s293, 8
      %s295 = scalar_lea.vmem %s6, %s294
      %p296 = scmp.lt.s32.totalorder %s19, 1
      %s297 = scalar_select %p296, %s19, 1
      %s298 = smul.addr %s297, 8
      %s299 = scalar_lea.vmem %s7, %s298
      %v300 = vld [vmem:[%s286] sm:$0xff]
      %v301 = vld [vmem:[%s286 + $0x8] sm:$0xff]
      %v302 = vld [vmem:[%s1] sm:$0xff]
      %304 = vset.pattern.permute.xlu0 0
      %305 = vperm.xlu0 %304, %v302
      %v306 = vpop.permute.xlu0 %305
      %v308 = vmul.f32 %v300, %v306
      %v309 = vmul.f32 %v301, %v306
      %v310 = vld [vmem:[%s2] sm:$0xff]
      %312 = vset.pattern.permute.xlu0 0
      %313 = vperm.xlu0 %312, %v310
      %v314 = vpop.permute.xlu0 %313
      %v316 = vadd.f32 %v308, %v314
      %v317 = vadd.f32 %v309, %v314
      %v318 = vmax.f32 %v316, 0.0
      %v319 = vmax.f32 %v317, 0.0
      %322 = vrot.lane.b32.xlu0 %v318, 17
      %v323 = vpop.permute.xlu0 %322
      %324 = vrot.lane.b32.xlu0 %v319, 17
      %v325 = vpop.permute.xlu0 %324
      %vm326 = vcmask 138240
      %v327 = vsel %vm326, %v323, %v325
      %v330 = vsel %vm326, 0.0, %v323
      %331 = vrot.lane.b32.xlu0 %v318, 16
      %v332 = vpop.permute.xlu0 %331
      %333 = vrot.lane.b32.xlu0 %v319, 16
      %v334 = vpop.permute.xlu0 %333
      %vm335 = vcmask 130048
      %v336 = vsel %vm335, %v332, %v334
      %v339 = vsel %vm335, 0.0, %v332
      %340 = vrot.lane.b32.xlu0 %v318, 15
      %v341 = vpop.permute.xlu0 %340
      %342 = vrot.lane.b32.xlu0 %v319, 15
      %v343 = vpop.permute.xlu0 %342
      %vm344 = vcmask 121856
      %v345 = vsel %vm344, %v341, %v343
      %v348 = vsel %vm344, 0.0, %v341
      %349 = vrot.lane.b32.xlu0 %v318, 1
      %v350 = vpop.permute.xlu0 %349
      %351 = vrot.lane.b32.xlu0 %v319, 1
      %v352 = vpop.permute.xlu0 %351
      %vm353 = vcmask 7168
      %v354 = vsel %vm353, %v350, %v352
      %v357 = vsel %vm353, 0.0, %v350
      %358 = vrot.lane.b32.xlu0 %v318, 127
      %v359 = vpop.permute.xlu0 %358
      %360 = vrot.lane.b32.xlu0 %v319, 127
      %v361 = vpop.permute.xlu0 %360
      %vm362 = vcmask 1039360
      %v363 = vsel %vm362, %v359, %v361
      %v366 = vsel %vm362, %v361, 0.0
      %367 = vrot.lane.b32.xlu0 %v318, 113
      %v368 = vpop.permute.xlu0 %367
      %369 = vrot.lane.b32.xlu0 %v319, 113
      %v370 = vpop.permute.xlu0 %369
      %vm371 = vcmask 924672
      %v372 = vsel %vm371, %v368, %v370
      %v375 = vsel %vm371, %v370, 0.0
      %376 = vrot.lane.b32.xlu0 %v318, 112
      %v377 = vpop.permute.xlu0 %376
      %378 = vrot.lane.b32.xlu0 %v319, 112
      %v379 = vpop.permute.xlu0 %378
      %vm380 = vcmask 916480
      %v381 = vsel %vm380, %v377, %v379
      %v384 = vsel %vm380, %v379, 0.0
      %385 = vrot.lane.b32.xlu0 %v318, 111
      %v386 = vpop.permute.xlu0 %385
      %387 = vrot.lane.b32.xlu0 %v319, 111
      %v388 = vpop.permute.xlu0 %387
      %vm389 = vcmask 908288
      %v390 = vsel %vm389, %v386, %v388
      %v393 = vsel %vm389, %v388, 0.0
      %v394 = vld [vmem:[%s3] sm:$0xff]
      %v395 = vld [vmem:[%s3 + $0x8] sm:$0xff]
      %v396 = vld [vmem:[%s3 + $0x10] sm:$0xff]
      %v397 = vld [vmem:[%s3 + $0x18] sm:$0xff]
      %v398 = vld [vmem:[%s3 + $0x20] sm:$0xff]
      %v399 = vld [vmem:[%s3 + $0x28] sm:$0xff]
      %v400 = vld [vmem:[%s3 + $0x30] sm:$0xff]
      %v401 = vld [vmem:[%s3 + $0x38] sm:$0xff]
      %v402 = vld [vmem:[%s3 + $0x40] sm:$0xff]
      %v403 = vld [vmem:[%s3 + $0x48] sm:$0xff]
      %v404 = vld [vmem:[%s3 + $0x50] sm:$0xff]
      %v405 = vld [vmem:[%s3 + $0x58] sm:$0xff]
      %v406 = vld [vmem:[%s3 + $0x60] sm:$0xff]
      %v407 = vld [vmem:[%s3 + $0x68] sm:$0xff]
      %v408 = vld [vmem:[%s3 + $0x70] sm:$0xff]
      %v409 = vld [vmem:[%s3 + $0x78] sm:$0xff]
      %v410 = vld [vmem:[%s3 + $0x80] sm:$0xff]
      %v411 = vld [vmem:[%s3 + $0x88] sm:$0xff]
      %v412 = vmul.f32 %v330, %v394
      %v413 = vmul.f32 %v327, %v395
      %v414 = vmul.f32 %v339, %v396
      %v415 = vmul.f32 %v336, %v397
      %v416 = vmul.f32 %v348, %v398
      %v417 = vmul.f32 %v345, %v399
      %v418 = vmul.f32 %v357, %v400
      %v419 = vmul.f32 %v354, %v401
      %v420 = vmul.f32 %v318, %v402
      %v421 = vmul.f32 %v319, %v403
      %v422 = vmul.f32 %v363, %v404
      %v423 = vmul.f32 %v366, %v405
      %v424 = vmul.f32 %v372, %v406
      %v425 = vmul.f32 %v375, %v407
      %v426 = vmul.f32 %v381, %v408
      %v427 = vmul.f32 %v384, %v409
      %v428 = vmul.f32 %v390, %v410
      %v429 = vmul.f32 %v393, %v411
      %v430 = vld [vmem:[%s4] sm:$0xff]
      %vm431 = vcmask 588800
      %v433 = vsel %vm431, %v430, 0
      %435 = vmatpush.msra.mxu0 0.0
      %436 = vmatpush.msra.mxu0 0.0
      %437 = vmatpush.msra.mxu0 0.0
      %438 = vmatpush.msra.mxu0 0.0
      %439 = vmatpush.msra.mxu0 0.0
      %440 = vmatpush.msra.mxu0 0.0
      %441 = vmatpush.msra.mxu0 0.0
      %442 = vmatpush.msra.mxu0 %v428
      %443 = vmatpush.msra.mxu0 %v426
      %444 = vmatpush.msra.mxu0 %v424
      %445 = vmatpush.msra.mxu0 %v422
      %446 = vmatpush.msra.mxu0 %v420
      %447 = vmatpush.msra.mxu0 %v418
      %448 = vmatpush.msra.mxu0 %v416
      %449 = vmatpush.msra.mxu0 %v414
      %450 = vmatpush.msra.mxu0 %v412
      %451 = vmatmul.f32.gmra.mxu0 %v433
      %v452 = vpop.f32.mrf.mxu0
      %v453 = vadd.f32 0.0, %v452
      %454 = vdwg.mxu0
      %455 = vmatpush.msra.mxu0 0.0
      %456 = vmatpush.msra.mxu0 0.0
      %457 = vmatpush.msra.mxu0 0.0
      %458 = vmatpush.msra.mxu0 0.0
      %459 = vmatpush.msra.mxu0 0.0
      %460 = vmatpush.msra.mxu0 0.0
      %461 = vmatpush.msra.mxu0 0.0
      %462 = vmatpush.msra.mxu0 %v429
      %463 = vmatpush.msra.mxu0 %v427
      %464 = vmatpush.msra.mxu0 %v425
      %465 = vmatpush.msra.mxu0 %v423
      %466 = vmatpush.msra.mxu0 %v421
      %467 = vmatpush.msra.mxu0 %v419
      %468 = vmatpush.msra.mxu0 %v417
      %469 = vmatpush.msra.mxu0 %v415
      %470 = vmatpush.msra.mxu0 %v413
      %471 = vmatmul.f32.gmra.mxu0 %v433
      %v472 = vpop.f32.mrf.mxu0
      %v473 = vadd.f32 0.0, %v472
      %474 = vdwg.mxu0
      %475 = vst [vmem:[%s291] sm:$0xff] %v453
      %476 = vst [vmem:[%s291 + $0x8] sm:$0xff] %v473
      %v477 = vadd.f32 %v453, %v473
      %478 = vadd.xlane.f32.xlu0 %v477
      %v479 = vpop.xlane.xlu0 %478
      %480 = vst.msk [vmem:[%s295] sm:$0xff] %vm353, %v479
      %v481 = vmul.f32 %v479, 0.00390625
      %v482 = vsub.f32 %v453, %v481
      %v483 = vsub.f32 %v473, %v481
      %v484 = vmul.f32 %v482, %v482
      %v485 = vmul.f32 %v483, %v483
      %v486 = vadd.f32 %v484, %v485
      %487 = vadd.xlane.f32.xlu0 %v486
      %v488 = vpop.xlane.xlu0 %487
      %489 = vst.msk [vmem:[%s299] sm:$0xff] %vm353, %v488
      %p490 = scmp.lt.s32.totalorder %s19, 1
      %s491 = scalar_select %p490, %s19, 1
      %s492 = smul.addr %s491, 2
      %s493 = smul.addr %s492, 8
      %s494 = scalar_lea.vmem %s5, %s493
      %p495 = scmp.lt.s32.totalorder %s19, 1
      %s496 = scalar_select %p495, %s19, 1
      %s497 = smul.addr %s496, 8
      %s498 = scalar_lea.vmem %s6, %s497
      %p499 = scmp.lt.s32.totalorder %s19, 1
      %s500 = scalar_select %p499, %s19, 1
      %s501 = smul.addr %s500, 8
      %s502 = scalar_lea.vmem %s7, %s501
      // Predicated region
      $region41: #{base_conv2d_forward.3} parent=39 // pred_check
        %p503 = pneg %p147
      $region42: #{base_conv2d_forward.3} parent=39 // pred_check_branch
        %505 = sbr.rel (%p503) target = $region44
      $region43: #{base_conv2d_forward.3} parent=39 // pred_region
        _
      $region44: #{base_conv2d_forward.3} parent=39 // pred_fallthru
        _
      // Predicated region
      $region45: #{base_conv2d_forward.3} parent=39 // pred_check
        %p506 = pneg %p173
      $region46: #{base_conv2d_forward.3} parent=39 // pred_check_branch
        %508 = sbr.rel (%p506) target = $region48
      $region47: #{base_conv2d_forward.3} parent=39 // pred_region
        _
      $region48: #{base_conv2d_forward.3} parent=39 // pred_fallthru
        _
      // Predicated region
      $region49: #{base_conv2d_forward.3} parent=39 // pred_check
        %p509 = pneg %p199
      $region50: #{base_conv2d_forward.3} parent=39 // pred_check_branch
        %511 = sbr.rel (%p509) target = $region52
      $region51: #{base_conv2d_forward.3} parent=39 // pred_region
        _
      $region52: #{base_conv2d_forward.3} parent=39 // pred_fallthru
        _
    $region40: #{base_conv2d_forward.3} parent=5 // pred_fallthru
      _
    %p512 = scmp.le.s32.totalorder 2, %s14
    // Predicated region
    $region53: #{base_conv2d_forward.3} parent=5 // pred_check
      %p513 = pneg %p512
    $region54: #{base_conv2d_forward.3} parent=5 // pred_check_branch
      %515 = sbr.rel (%p513) target = $region56
    $region55: #{base_conv2d_forward.3} parent=5 // pred_region
      %s516 = ssub.s32 %s14, 2
      // Predicated region
      $region57: #{base_conv2d_forward.3} parent=55 // pred_check
        %p517 = pneg %p153
      $region58: #{base_conv2d_forward.3} parent=55 // pred_check_branch
        %519 = sbr.rel (%p517) target = $region60
      $region59: #{base_conv2d_forward.3} parent=55 // pred_region
        %p520 = scmp.lt.s32.totalorder %s20, 1
        %s521 = scalar_select %p520, %s20, 1
        %s522 = smul.addr %s521, 2
        %s523 = smul.addr %s522, 8
        %s524 = scalar_lea.vmem %s5, %s523
      $region60: #{base_conv2d_forward.3} parent=55 // pred_fallthru
        _
      // Predicated region
      $region61: #{base_conv2d_forward.3} parent=55 // pred_check
        %p525 = pneg %p179
      $region62: #{base_conv2d_forward.3} parent=55 // pred_check_branch
        %527 = sbr.rel (%p525) target = $region64
      $region63: #{base_conv2d_forward.3} parent=55 // pred_region
        %p528 = scmp.lt.s32.totalorder %s20, 1
        %s529 = scalar_select %p528, %s20, 1
        %s530 = smul.addr %s529, 8
        %s531 = scalar_lea.vmem %s6, %s530
      $region64: #{base_conv2d_forward.3} parent=55 // pred_fallthru
        _
      // Predicated region
      $region65: #{base_conv2d_forward.3} parent=55 // pred_check
        %p532 = pneg %p205
      $region66: #{base_conv2d_forward.3} parent=55 // pred_check_branch
        %534 = sbr.rel (%p532) target = $region68
      $region67: #{base_conv2d_forward.3} parent=55 // pred_region
        %p535 = scmp.lt.s32.totalorder %s20, 1
        %s536 = scalar_select %p535, %s20, 1
        %s537 = smul.addr %s536, 8
        %s538 = scalar_lea.vmem %s7, %s537
      $region68: #{base_conv2d_forward.3} parent=55 // pred_fallthru
        _
    $region56: #{base_conv2d_forward.3} parent=5 // pred_fallthru
      _
  $region6: #{base_conv2d_forward.3} parent=0 // loop_footer
    %s18 = sadd.s32 1, %s14
  $region7: #{base_conv2d_forward.3} parent=0 // loop_footer_branch
    %13 = sbr.rel target = $region3
  $region8: #{base_conv2d_forward.3} parent=0 // loop_exit
    _

// kernel: base_conv2d_forward.2
$region0: #{base_conv2d_forward.2}
  #allocation0 [shape = 'u32[]', space=smem, size = 0x4, offset = 0x4, fixed_abs, tag = 'smem constant byte address 0x4 - core index']
  #allocation1 [shape = 'u32[72,128]{1,0:T(1,128)}', space=vmem, size = 0x9000, scoped, tag = 'internal scratch']
  %s0 = inlined_call_operand.vmem [shape: f32[2,4,256], index: 0, kind: input, shape index: {}]
  %s1 = inlined_call_operand.vmem [shape: f32[36,256], index: 1, kind: input, shape index: {}]
  %s2 = inlined_call_operand.vmem [shape: f32[8,36], index: 2, kind: input, shape index: {}]
  %s3 = inlined_call_operand.vmem [shape: f32[2,8,256], index: 3, kind: output, shape index: {0}]
  %s4 = inlined_call_operand.vmem [shape: f32[2,8,1], index: 4, kind: output, shape index: {1}]
  %s5 = inlined_call_operand.vmem [shape: f32[2,8,1], index: 5, kind: output, shape index: {2}]
  %6 = xla_tuple %s3, %s4, %s5
  %s7 = sld [smem:[#allocation0]]
  $region61: #{base_conv2d_forward.2} parent=0
    _
  %s9 = ssub.s32 1, %s7
  %s10 = scalar_select 0, %s9, %s7
  loop: start=0, step=1, limit=4
  $region2: #{base_conv2d_forward.2} parent=0 // loop_pre_header
    _
  $region3: #{base_conv2d_forward.2} parent=0 // loop_header
    %s12 = sphi 0, %s16
    %p13 = scmp.ge.s32.totalorder %s12, 4
    %s22 = sphi 0, %s24
    %s25 = sphi 0, %s22
    %s26 = sphi 0, %s25
    %s42 = sphi 0, %s26
    %s46 = sphi 0, %s46
    %s48 = sphi 0, %s46
    %s49 = sphi 0, %s48
    %s63 = sphi 0, %s49
    %s67 = sphi 0, %s67
    %s69 = sphi 0, %s67
    %s70 = sphi 0, %s69
    %s84 = sphi 0, %s70
    %s90 = sphi 0, %s92
    %s93 = sphi 0, %s90
    %s94 = sphi 0, %s93
    %s110 = sphi 0, %s94
    %s116 = sphi 0, %s118
    %s119 = sphi 0, %s116
    %s120 = sphi 0, %s119
    %s136 = sphi 0, %s120
    %s142 = sphi 0, %s144
    %s145 = sphi 0, %s142
    %s146 = sphi 0, %s145
    %s162 = sphi 0, %s146
  $region4: #{base_conv2d_forward.2} parent=0 // loop_header_branch
    %15 = sbr.rel (%p13) target = $region8
  $region5: #{base_conv2d_forward.2} parent=0 // loop_body
    %s17 = ssub.s32 %s12, 1
    %s18 = ssub.s32 %s12, 2
    %s19 = sadd.s32 %s12, 1
    %s20 = ssub.s32 %s12, %s19
    %p21 = scmp.eq.s32.totalorder %s20, 0
    %s23 = sadd.s32 %s22, 1
    %s24 = scalar_select %p21, %s22, %s23
    %p27 = pneg %p21
    %p28 = scmp.eq.s32.totalorder %s12, 1
    %p29 = por %p27, %p28
    %p30 = scmp.ne.s32.totalorder %s22, %s25
    %p31 = scmp.eq.s32.totalorder %s12, 0
    %p32 = por %p30, %p31
    %p33 = scmp.ne.s32.totalorder %s22, %s25
    %p34 = scmp.eq.s32.totalorder %s17, 1
    %p35 = por %p33, %p34
    %p36 = scmp.ne.s32.totalorder %s25, %s26
    %p37 = scmp.eq.s32.totalorder %s17, 0
    %p38 = por %p36, %p37
    %p39 = scmp.ne.s32.totalorder %s25, %s26
    %p40 = scmp.eq.s32.totalorder %s18, 1
    %p41 = por %p39, %p40
    %p43 = scmp.ne.s32.totalorder %s26, %s42
    %p44 = scmp.eq.s32.totalorder %s18, 0
    %p45 = por %p43, %p44
    %s47 = sadd.s32 %s46, 1
    %p50 = scmp.eq.s32.totalorder %s12, 1
    %p51 = scmp.ne.s32.totalorder %s46, %s48
    %p52 = scmp.eq.s32.totalorder %s12, 0
    %p53 = por %p51, %p52
    %p54 = scmp.ne.s32.totalorder %s46, %s48
    %p55 = scmp.eq.s32.totalorder %s17, 1
    %p56 = por %p54, %p55
    %p57 = scmp.ne.s32.totalorder %s48, %s49
    %p58 = scmp.eq.s32.totalorder %s17, 0
    %p59 = por %p57, %p58
    %p60 = scmp.ne.s32.totalorder %s48, %s49
    %p61 = scmp.eq.s32.totalorder %s18, 1
    %p62 = por %p60, %p61
    %p64 = scmp.ne.s32.totalorder %s49, %s63
    %p65 = scmp.eq.s32.totalorder %s18, 0
    %p66 = por %p64, %p65
    %s68 = sadd.s32 %s67, 1
    %p71 = scmp.eq.s32.totalorder %s12, 1
    %p72 = scmp.ne.s32.totalorder %s67, %s69
    %p73 = scmp.eq.s32.totalorder %s12, 0
    %p74 = por %p72, %p73
    %p75 = scmp.ne.s32.totalorder %s67, %s69
    %p76 = scmp.eq.s32.totalorder %s17, 1
    %p77 = por %p75, %p76
    %p78 = scmp.ne.s32.totalorder %s69, %s70
    %p79 = scmp.eq.s32.totalorder %s17, 0
    %p80 = por %p78, %p79
    %p81 = scmp.ne.s32.totalorder %s69, %s70
    %p82 = scmp.eq.s32.totalorder %s18, 1
    %p83 = por %p81, %p82
    %p85 = scmp.ne.s32.totalorder %s70, %s84
    %p86 = scmp.eq.s32.totalorder %s18, 0
    %p87 = por %p85, %p86
    %s88 = ssub.s32 %s12, %s19
    %p89 = scmp.eq.s32.totalorder %s88, 0
    %s91 = sadd.s32 %s90, 1
    %s92 = scalar_select %p89, %s90, %s91
    %p95 = pneg %p89
    %p96 = scmp.eq.s32.totalorder %s12, 1
    %p97 = por %p95, %p96
    %p98 = scmp.ne.s32.totalorder %s90, %s93
    %p99 = scmp.eq.s32.totalorder %s12, 0
    %p100 = por %p98, %p99
    %p101 = scmp.ne.s32.totalorder %s90, %s93
    %p102 = scmp.eq.s32.totalorder %s17, 1
    %p103 = por %p101, %p102
    %p104 = scmp.ne.s32.totalorder %s93, %s94
    %p105 = scmp.eq.s32.totalorder %s17, 0
    %p106 = por %p104, %p105
    %p107 = scmp.ne.s32.totalorder %s93, %s94
    %p108 = scmp.eq.s32.totalorder %s18, 1
    %p109 = por %p107, %p108
    %p111 = scmp.ne.s32.totalorder %s94, %s110
    %p112 = scmp.eq.s32.totalorder %s18, 0
    %p113 = por %p111, %p112
    %s114 = ssub.s32 %s12, %s19
    %p115 = scmp.eq.s32.totalorder %s114, 0
    %s117 = sadd.s32 %s116, 1
    %s118 = scalar_select %p115, %s116, %s117
    %p121 = pneg %p115
    %p122 = scmp.eq.s32.totalorder %s12, 1
    %p123 = por %p121, %p122
    %p124 = scmp.ne.s32.totalorder %s116, %s119
    %p125 = scmp.eq.s32.totalorder %s12, 0
    %p126 = por %p124, %p125
    %p127 = scmp.ne.s32.totalorder %s116, %s119
    %p128 = scmp.eq.s32.totalorder %s17, 1
    %p129 = por %p127, %p128
    %p130 = scmp.ne.s32.totalorder %s119, %s120
    %p131 = scmp.eq.s32.totalorder %s17, 0
    %p132 = por %p130, %p131
    %p133 = scmp.ne.s32.totalorder %s119, %s120
    %p134 = scmp.eq.s32.totalorder %s18, 1
    %p135 = por %p133, %p134
    %p137 = scmp.ne.s32.totalorder %s120, %s136
    %p138 = scmp.eq.s32.totalorder %s18, 0
    %p139 = por %p137, %p138
    %s140 = ssub.s32 %s12, %s19
    %p141 = scmp.eq.s32.totalorder %s140, 0
    %s143 = sadd.s32 %s142, 1
    %s144 = scalar_select %p141, %s142, %s143
    %p147 = pneg %p141
    %p148 = scmp.eq.s32.totalorder %s12, 1
    %p149 = por %p147, %p148
    %p150 = scmp.ne.s32.totalorder %s142, %s145
    %p151 = scmp.eq.s32.totalorder %s12, 0
    %p152 = por %p150, %p151
    %p153 = scmp.ne.s32.totalorder %s142, %s145
    %p154 = scmp.eq.s32.totalorder %s17, 1
    %p155 = por %p153, %p154
    %p156 = scmp.ne.s32.totalorder %s145, %s146
    %p157 = scmp.eq.s32.totalorder %s17, 0
    %p158 = por %p156, %p157
    %p159 = scmp.ne.s32.totalorder %s145, %s146
    %p160 = scmp.eq.s32.totalorder %s18, 1
    %p161 = por %p159, %p160
    %p163 = scmp.ne.s32.totalorder %s146, %s162
    %p164 = scmp.eq.s32.totalorder %s18, 0
    %p165 = por %p163, %p164
    %p166 = scmp.le.s32.totalorder 1, %s12
    %p167 = scmp.lt.s32.totalorder %s12, 3
    %p168 = pnand %p166, %p167
    %p169 = pneg %p168
    // Predicated region
    $region9: #{base_conv2d_forward.2} parent=5 // pred_check
      _
    $region10: #{base_conv2d_forward.2} parent=5 // pred_check_branch
      %171 = sbr.rel (%p168) target = $region12
    $region11: #{base_conv2d_forward.2} parent=5 // pred_region
      %s172 = ssub.s32 %s12, 1
      // Predicated region
      $region13: #{base_conv2d_forward.2} parent=11 // pred_check
        %p173 = pneg %p59
      $region14: #{base_conv2d_forward.2} parent=11 // pred_check_branch
        %175 = sbr.rel (%p173) target = $region16
      $region15: #{base_conv2d_forward.2} parent=11 // pred_region
        _
      $region16: #{base_conv2d_forward.2} parent=11 // pred_fallthru
        _
      // Predicated region
      $region17: #{base_conv2d_forward.2} parent=11 // pred_check
        %p176 = pneg %p80
      $region18: #{base_conv2d_forward.2} parent=11 // pred_check_branch
        %178 = sbr.rel (%p176) target = $region20
      $region19: #{base_conv2d_forward.2} parent=11 // pred_region
        _
      $region20: #{base_conv2d_forward.2} parent=11 // pred_fallthru
        _
    $region12: #{base_conv2d_forward.2} parent=5 // pred_fallthru
      _
    %p179 = scmp.lt.s32.totalorder %s12, 2
    // Predicated region
    $region21: #{base_conv2d_forward.2} parent=5 // pred_check
      %p180 = pneg %p179
    $region22: #{base_conv2d_forward.2} parent=5 // pred_check_branch
      %182 = sbr.rel (%p180) target = $region24
    $region23: #{base_conv2d_forward.2} parent=5 // pred_region
      // Predicated region
      $region25: #{base_conv2d_forward.2} parent=23 // pred_check
        %p183 = pneg %p32
      $region26: #{base_conv2d_forward.2} parent=23 // pred_check_branch
        %185 = sbr.rel (%p183) target = $region28
      $region27: #{base_conv2d_forward.2} parent=23 // pred_region
        %p186 = scmp.lt.s32.totalorder %s12, 1
        %s187 = scalar_select %p186, %s12, 1
        %s188 = smul.addr %s187, 2
        %s189 = smul.addr %s188, 4
        %s190 = scalar_lea.vmem %s0, %s189
      $region28: #{base_conv2d_forward.2} parent=23 // pred_fallthru
        _
    $region24: #{base_conv2d_forward.2} parent=5 // pred_fallthru
      _
    %p191 = scmp.le.s32.totalorder 1, %s12
    %p192 = scmp.lt.s32.totalorder %s12, 3
    %p193 = pnand %p191, %p192
    %p194 = pneg %p193
    // Predicated region
    $region29: #{base_conv2d_forward.2} parent=5 // pred_check
      _
    $region30: #{base_conv2d_forward.2} parent=5 // pred_check_branch
      %196 = sbr.rel (%p193) target = $region32
    $region31: #{base_conv2d_forward.2} parent=5 // pred_region
      %s197 = ssub.s32 %s12, 1
      %p198 = scmp.lt.s32.totalorder %s17, 1
      %s199 = scalar_select %p198, %s17, 1
      %s200 = smul.addr %s199, 2
      %s201 = smul.addr %s200, 4
      %s202 = scalar_lea.vmem %s0, %s201
      %p203 = pneg %p38
      %p204 = pneg %p35
      %p205 = pneg %p59
      %p206 = pneg %p56
      %p207 = pneg %p80
      %p208 = pneg %p77
      %p209 = pneg %p106
      %p210 = pneg %p103
      %p211 = scmp.lt.s32.totalorder %s17, 1
      %s212 = scalar_select %p211, %s17, 1
      %s213 = smul.addr %s212, 2
      %s214 = smul.addr %s213, 8
      %s215 = scalar_lea.vmem %s3, %s214
      %p216 = pneg %p132
      %p217 = pneg %p129
      %p218 = scmp.lt.s32.totalorder %s17, 1
      %s219 = scalar_select %p218, %s17, 1
      %s220 = smul.addr %s219, 8
      %s221 = scalar_lea.vmem %s4, %s220
      %p222 = pneg %p158
      %p223 = pneg %p155
      %p224 = scmp.lt.s32.totalorder %s17, 1
      %s225 = scalar_select %p224, %s17, 1
      %s226 = smul.addr %s225, 8
      %s227 = scalar_lea.vmem %s5, %s226
      %p228 = scmp.lt.s32.totalorder %s17, 1
      %s229 = scalar_select %p228, %s17, 1
      %s230 = smul.addr %s229, 2
      %s231 = smul.addr %s230, 4
      %s232 = scalar_lea.vmem %s0, %s231
      %p233 = scmp.lt.s32.totalorder %s17, 1
      %s234 = scalar_select %p233, %s17, 1
      %s235 = smul.addr %s234, 2
      %s236 = smul.addr %s235, 8
      %s237 = scalar_lea.vmem %s3, %s236
      %p238 = scmp.lt.s32.totalorder %s17, 1
      %s239 = scalar_select %p238, %s17, 1
      %s240 = smul.addr %s239, 8
      %s241 = scalar_lea.vmem %s4, %s240
      %p242 = scmp.lt.s32.totalorder %s17, 1
      %s243 = scalar_select %p242, %s17, 1
      %s244 = smul.addr %s243, 8
      %s245 = scalar_lea.vmem %s5, %s244
      %v246 = vld [vmem:[%s232] sm:$0xff]
      %248 = vst [vmem:[#allocation1] ss:$2 sm:$0xff] %v246
      %v249 = vld.sshfl [vmem:[#allocation1] sm:$0xff pattern:$0x75316420]
      %v250 = vld.sshfl [vmem:[#allocation1 + $0x8] sm:$0xff pattern:$0x75316420]
      %251 = vrot.lane.b32.xlu0 %v249, 17
      %v252 = vpop.permute.xlu0 %251
      %253 = vrot.lane.b32.xlu0 %v250, 17
      %v254 = vpop.permute.xlu0 %253
      %vm255 = vcmask 138240
      %v256 = vsel %vm255, %v252, %v254
      %v259 = vsel %vm255, 0.0, %v252
      %260 = vst [vmem:[#allocation1] ss:$2 sm:$0xff] %v246
      %v261 = vld.sshfl [vmem:[#allocation1] sm:$0xff pattern:$0x75316420]
      %v262 = vld.sshfl [vmem:[#allocation1 + $0x8] sm:$0xff pattern:$0x75316420]
      %263 = vrot.lane.b32.xlu0 %v261, 16
      %v264 = vpop.permute.xlu0 %263
      %265 = vrot.lane.b32.xlu0 %v262, 16
      %v266 = vpop.permute.xlu0 %265
      %vm267 = vcmask 130048
      %v268 = vsel %vm267, %v264, %v266
      %v270 = vsel %vm267, 0.0, %v264
      %271 = vst [vmem:[#allocation1] ss:$2 sm:$0xff] %v246
      %v272 = vld.sshfl [vmem:[#allocation1] sm:$0xff pattern:$0x75316420]
      %v273 = vld.sshfl [vmem:[#allocation1 + $0x8] sm:$0xff pattern:$0x75316420]
      %274 = vrot.lane.b32.xlu0 %v272, 15
      %v275 = vpop.permute.xlu0 %274
      %276 = vrot.lane.b32.xlu0 %v273, 15
      %v277 = vpop.permute.xlu0 %276
      %vm278 = vcmask 121856
      %v279 = vsel %vm278, %v275, %v277
      %v282 = vsel %vm278, 0.0, %v275
      %283 = vst [vmem:[#allocation1] ss:$2 sm:$0xff] %v246
      %v284 = vld.sshfl [vmem:[#allocation1] sm:$0xff pattern:$0x75316420]
      %v285 = vld.sshfl [vmem:[#allocation1 + $0x8] sm:$0xff pattern:$0x75316420]
      %286 = vrot.lane.b32.xlu0 %v284, 1
      %v287 = vpop.permute.xlu0 %286
      %288 = vrot.lane.b32.xlu0 %v285, 1
      %v289 = vpop.permute.xlu0 %288
      %vm290 = vcmask 7168
      %v291 = vsel %vm290, %v287, %v289
      %v293 = vsel %vm290, 0.0, %v287
      %294 = vst [vmem:[#allocation1] ss:$2 sm:$0xff] %v246
      %v295 = vld.sshfl [vmem:[#allocation1] sm:$0xff pattern:$0x75316420]
      %v296 = vld.sshfl [vmem:[#allocation1 + $0x8] sm:$0xff pattern:$0x75316420]
      %297 = vrot.lane.b32.xlu0 %v295, 127
      %v298 = vpop.permute.xlu0 %297
      %299 = vrot.lane.b32.xlu0 %v296, 127
      %v300 = vpop.permute.xlu0 %299
      %vm301 = vcmask 1039360
      %v302 = vsel %vm301, %v298, %v300
      %v304 = vsel %vm301, %v300, 0.0
      %305 = vst [vmem:[#allocation1] ss:$2 sm:$0xff] %v246
      %v306 = vld.sshfl [vmem:[#allocation1] sm:$0xff pattern:$0x75316420]
      %v307 = vld.sshfl [vmem:[#allocation1 + $0x8] sm:$0xff pattern:$0x75316420]
      %308 = vrot.lane.b32.xlu0 %v306, 113
      %v309 = vpop.permute.xlu0 %308
      %310 = vrot.lane.b32.xlu0 %v307, 113
      %v311 = vpop.permute.xlu0 %310
      %vm312 = vcmask 924672
      %v313 = vsel %vm312, %v309, %v311
      %v316 = vsel %vm312, %v311, 0.0
      %317 = vst [vmem:[#allocation1] ss:$2 sm:$0xff] %v246
      %v318 = vld.sshfl [vmem:[#allocation1] sm:$0xff pattern:$0x75316420]
      %v319 = vld.sshfl [vmem:[#allocation1 + $0x8] sm:$0xff pattern:$0x75316420]
      %320 = vrot.lane.b32.xlu0 %v318, 112
      %v321 = vpop.permute.xlu0 %320
      %322 = vrot.lane.b32.xlu0 %v319, 112
      %v323 = vpop.permute.xlu0 %322
      %vm324 = vcmask 916480
      %v325 = vsel %vm324, %v321, %v323
      %v327 = vsel %vm324, %v323, 0.0
      %328 = vst [vmem:[#allocation1] ss:$2 sm:$0xff] %v246
      %v329 = vld.sshfl [vmem:[#allocation1] sm:$0xff pattern:$0x75316420]
      %v330 = vld.sshfl [vmem:[#allocation1 + $0x8] sm:$0xff pattern:$0x75316420]
      %331 = vrot.lane.b32.xlu0 %v329, 111
      %v332 = vpop.permute.xlu0 %331
      %333 = vrot.lane.b32.xlu0 %v330, 111
      %v334 = vpop.permute.xlu0 %333
      %vm335 = vcmask 908288
      %v336 = vsel %vm335, %v332, %v334
      %v339 = vsel %vm335, %v334, 0.0
      %v341 = vrot.slane %v270, 4
      %v342 = vrot.slane %v268, 4
      %v346 = vrot.slane %v293, 4
      %v347 = vrot.slane %v291, 4
      %350 = vst [vmem:[#allocation1] ss:$2 sm:$0xff] %v246
      %v351 = vld.sshfl [vmem:[#allocation1] sm:$0xff pattern:$0x75316420]
      %v352 = vld.sshfl [vmem:[#allocation1 + $0x8] sm:$0xff pattern:$0x75316420]
      %v356 = vrot.slane %v302, 4
      %v357 = vrot.slane %v304, 4
      %v361 = vrot.slane %v325, 4
      %v362 = vrot.slane %v327, 4
      %vm365 = vcmask 1043456
      %v366 = vsel %vm365, %v259, %v341
      %v367 = vsel %vm365, %v256, %v342
      %v368 = vsel %vm365, %v282, %v346
      %v369 = vsel %vm365, %v279, %v347
      %v370 = vsel %vm365, %v351, %v356
      %v371 = vsel %vm365, %v352, %v357
      %v372 = vsel %vm365, %v313, %v361
      %v373 = vsel %vm365, %v316, %v362
      %v374 = vld [vmem:[%s1] sm:$0xff]
      %v375 = vld [vmem:[%s1 + $0x8] sm:$0xff]
      %v376 = vld [vmem:[%s1 + $0x10] sm:$0xff]
      %v377 = vld [vmem:[%s1 + $0x18] sm:$0xff]
      %v378 = vld [vmem:[%s1 + $0x20] sm:$0xff]
      %v379 = vld [vmem:[%s1 + $0x28] sm:$0xff]
      %v380 = vld [vmem:[%s1 + $0x30] sm:$0xff]
      %v381 = vld [vmem:[%s1 + $0x38] sm:$0xff]
      %v382 = vld [vmem:[%s1 + $0x40] sm:$0xf]
      %v383 = vld [vmem:[%s1 + $0x48] sm:$0xf]
      %v384 = vmul.f32 %v366, %v374
      %v385 = vmul.f32 %v367, %v375
      %v386 = vmul.f32 %v368, %v376
      %v387 = vmul.f32 %v369, %v377
      %v388 = vmul.f32 %v370, %v378
      %v389 = vmul.f32 %v371, %v379
      %v390 = vmul.f32 %v372, %v380
      %v391 = vmul.f32 %v373, %v381
      %v392 = vmul.f32 %v336, %v382
      %v393 = vmul.f32 %v339, %v383
      %v394 = vld [vmem:[%s2] sm:$0xff]
      %vm395 = vcmask 293888
      %v397 = vsel %vm395, %v394, 0
      %v400 = vsel %vm365, %v392, 0
      %v403 = vsel %vm365, %v393, 0
      %405 = vmatpush.msra.mxu0 0.0
      %406 = vmatpush.msra.mxu0 0.0
      %407 = vmatpush.msra.mxu0 0.0
      %408 = vmatpush.msra.mxu0 0.0
      %409 = vmatpush.msra.mxu0 0.0
      %410 = vmatpush.msra.mxu0 0.0
      %411 = vmatpush.msra.mxu0 0.0
      %412 = vmatpush.msra.mxu0 0.0
      %413 = vmatpush.msra.mxu0 0.0
      %414 = vmatpush.msra.mxu0 0.0
      %415 = vmatpush.msra.mxu0 0.0
      %416 = vmatpush.msra.mxu0 %v400
      %417 = vmatpush.msra.mxu0 %v390
      %418 = vmatpush.msra.mxu0 %v388
      %419 = vmatpush.msra.mxu0 %v386
      %420 = vmatpush.msra.mxu0 %v384
      %421 = vmatmul.f32.gmra.mxu0 %v397
      %v422 = vpop.f32.mrf.mxu0
      %v423 = vadd.f32 0.0, %v422
      %424 = vdwg.mxu0
      %425 = vmatpush.msra.mxu0 0.0
      %426 = vmatpush.msra.mxu0 0.0
      %427 = vmatpush.msra.mxu0 0.0
      %428 = vmatpush.msra.mxu0 0.0
      %429 = vmatpush.msra.mxu0 0.0
      %430 = vmatpush.msra.mxu0 0.0
      %431 = vmatpush.msra.mxu0 0.0
      %432 = vmatpush.msra.mxu0 0.0
      %433 = vmatpush.msra.mxu0 0.0
      %434 = vmatpush.msra.mxu0 0.0
      %435 = vmatpush.msra.mxu0 0.0
      %436 = vmatpush.msra.mxu0 %v403
      %437 = vmatpush.msra.mxu0 %v391
      %438 = vmatpush.msra.mxu0 %v389
      %439 = vmatpush.msra.mxu0 %v387
      %440 = vmatpush.msra.mxu0 %v385
      %441 = vmatmul.f32.gmra.mxu0 %v397
      %v442 = vpop.f32.mrf.mxu0
      %v443 = vadd.f32 0.0, %v442
      %444 = vdwg.mxu0
      %445 = vst [vmem:[%s237] sm:$0xff] %v423
      %446 = vst [vmem:[%s237 + $0x8] sm:$0xff] %v443
      %v447 = vadd.f32 %v423, %v443
      %448 = vadd.xlane.f32.xlu0 %v447
      %v449 = vpop.xlane.xlu0 %448
      %450 = vst.msk [vmem:[%s241] sm:$0xff] %vm290, %v449
      %v451 = vmul.f32 %v449, 0.00390625
      %v452 = vsub.f32 %v423, %v451
      %v453 = vsub.f32 %v443, %v451
      %v454 = vmul.f32 %v452, %v452
      %v455 = vmul.f32 %v453, %v453
      %v456 = vadd.f32 %v454, %v455
      %457 = vadd.xlane.f32.xlu0 %v456
      %v458 = vpop.xlane.xlu0 %457
      %459 = vst.msk [vmem:[%s245] sm:$0xff] %vm290, %v458
      %p460 = scmp.lt.s32.totalorder %s17, 1
      %s461 = scalar_select %p460, %s17, 1
      %s462 = smul.addr %s461, 2
      %s463 = smul.addr %s462, 8
      %s464 = scalar_lea.vmem %s3, %s463
      %p465 = scmp.lt.s32.totalorder %s17, 1
      %s466 = scalar_select %p465, %s17, 1
      %s467 = smul.addr %s466, 8
      %s468 = scalar_lea.vmem %s4, %s467
      %p469 = scmp.lt.s32.totalorder %s17, 1
      %s470 = scalar_select %p469, %s17, 1
      %s471 = smul.addr %s470, 8
      %s472 = scalar_lea.vmem %s5, %s471
      // Predicated region
      $region33: #{base_conv2d_forward.2} parent=31 // pred_check
        %p473 = pneg %p103
      $region34: #{base_conv2d_forward.2} parent=31 // pred_check_branch
        %475 = sbr.rel (%p473) target = $region36
      $region35: #{base_conv2d_forward.2} parent=31 // pred_region
        _
      $region36: #{base_conv2d_forward.2} parent=31 // pred_fallthru
        _
      // Predicated region
      $region37: #{base_conv2d_forward.2} parent=31 // pred_check
        %p476 = pneg %p129
      $region38: #{base_conv2d_forward.2} parent=31 // pred_check_branch
        %478 = sbr.rel (%p476) target = $region40
      $region39: #{base_conv2d_forward.2} parent=31 // pred_region
        _
      $region40: #{base_conv2d_forward.2} parent=31 // pred_fallthru
        _
      // Predicated region
      $region41: #{base_conv2d_forward.2} parent=31 // pred_check
        %p479 = pneg %p155
      $region42: #{base_conv2d_forward.2} parent=31 // pred_check_branch
        %481 = sbr.rel (%p479) target = $region44
      $region43: #{base_conv2d_forward.2} parent=31 // pred_region
        _
      $region44: #{base_conv2d_forward.2} parent=31 // pred_fallthru
        _
    $region32: #{base_conv2d_forward.2} parent=5 // pred_fallthru
      _
    %p482 = scmp.le.s32.totalorder 2, %s12
    // Predicated region
    $region45: #{base_conv2d_forward.2} parent=5 // pred_check
      %p483 = pneg %p482
    $region46: #{base_conv2d_forward.2} parent=5 // pred_check_branch
      %485 = sbr.rel (%p483) target = $region48
    $region47: #{base_conv2d_forward.2} parent=5 // pred_region
      %s486 = ssub.s32 %s12, 2
      // Predicated region
      $region49: #{base_conv2d_forward.2} parent=47 // pred_check
        %p487 = pneg %p109
      $region50: #{base_conv2d_forward.2} parent=47 // pred_check_branch
        %489 = sbr.rel (%p487) target = $region52
      $region51: #{base_conv2d_forward.2} parent=47 // pred_region
        %p490 = scmp.lt.s32.totalorder %s18, 1
        %s491 = scalar_select %p490, %s18, 1
        %s492 = smul.addr %s491, 2
        %s493 = smul.addr %s492, 8
        %s494 = scalar_lea.vmem %s3, %s493
      $region52: #{base_conv2d_forward.2} parent=47 // pred_fallthru
        _
      // Predicated region
      $region53: #{base_conv2d_forward.2} parent=47 // pred_check
        %p495 = pneg %p135
      $region54: #{base_conv2d_forward.2} parent=47 // pred_check_branch
        %497 = sbr.rel (%p495) target = $region56
      $region55: #{base_conv2d_forward.2} parent=47 // pred_region
        %p498 = scmp.lt.s32.totalorder %s18, 1
        %s499 = scalar_select %p498, %s18, 1
        %s500 = smul.addr %s499, 8
        %s501 = scalar_lea.vmem %s4, %s500
      $region56: #{base_conv2d_forward.2} parent=47 // pred_fallthru
        _
      // Predicated region
      $region57: #{base_conv2d_forward.2} parent=47 // pred_check
        %p502 = pneg %p161
      $region58: #{base_conv2d_forward.2} parent=47 // pred_check_branch
        %504 = sbr.rel (%p502) target = $region60
      $region59: #{base_conv2d_forward.2} parent=47 // pred_region
        %p505 = scmp.lt.s32.totalorder %s18, 1
        %s506 = scalar_select %p505, %s18, 1
        %s507 = smul.addr %s506, 8
        %s508 = scalar_lea.vmem %s5, %s507
      $region60: #{base_conv2d_forward.2} parent=47 // pred_fallthru
        _
    $region48: #{base_conv2d_forward.2} parent=5 // pred_fallthru
      _
  $region6: #{base_conv2d_forward.2} parent=0 // loop_footer
    %s16 = sadd.s32 1, %s12
  $region7: #{base_conv2d_forward.2} parent=0 // loop_footer_branch
    %11 = sbr.rel target = $region3
  $region8: #{base_conv2d_forward.2} parent=0 // loop_exit
    _

</llo_original>
